<compile_context>
chip_gen: v5e
topology: v5e:2x2
jax: 0.10.0
libtpu: 0.0.40
codegen_flags: <defaults>
</compile_context>

<pallas_src>
import numpy as np
import jax
import jax.numpy as jnp
from jax.experimental import pallas as pl
from jax.experimental.pallas import tpu as pltpu  # noqa: F401  (kept for completeness)

# -------------------- config ("args") --------------------
D_L = 8                     # latent dim
D_X = 4                     # observation dim
N_MLP_LAYERS = 2
DECODER_LAYER_DIMS = (32, 32)
T_LEN = 8                   # number of time steps
L_DIM = 2                   # leading dim of latent tensors (must be 2: 2*d_L*L == 4*d_L)
FE_HIDDEN = 128             # FeatureExtractor hidden width
LRELU = 0.01                # PyTorch default leaky-relu slope

SLAB_W = 128                # lane-dense output slab width (>= D_X*D_L + 2*D_L + D_X)

# TODO(synk): self.fc_out is defined in __init__ but never used in forward(); omitted.


# ==================== single fused Pallas kernel ====================

def _fused_kernel(t_ref, xh_ref, z_ref, ebig_ref,
                  aw_in_ref, ab_in_ref, aw_hid_ref, ab_hid_ref, aw_out_ref, ab_out_ref,
                  hw1_ref, hb1_ref, hw2_ref, hb2_ref,
                  dw0_ref, db0_ref, dw1_ref, db1_ref, dwf_ref, dbf_ref,
                  out_ref):
    f32 = jnp.float32

    # ---- (a) fused adjacency encoders (curr ++ pre): lrelu-MLP + sigmoid ----
    h = t_ref[...] * aw_in_ref[...] + ab_in_ref[...]                      # (T, 2*d_L); in_dim==1 -> bcast mul
    h = jnp.where(h > 0, h, LRELU * h)
    for j in range(aw_hid_ref.shape[0]):                                  # static unroll, block-diag hidden
        h = jnp.dot(h, aw_hid_ref[j], preferred_element_type=f32) + ab_hid_ref[j]
        h = jnp.where(h > 0, h, LRELU * h)
    adj = jax.nn.sigmoid(
        jnp.dot(h, aw_out_ref[...], preferred_element_type=f32) + ab_out_ref[...])   # (T, 2*d_X*d_L)
    n = adj.shape[1] // 2
    # rows 0..T-1 = Ct flat (recon), rows T..2T-1 = Ct_1 flat (pred)
    c_stack = jnp.concatenate([adj[:, :n], adj[:, n:]], axis=0)           # (2T, d_X*d_L)

    # ---- (b) fused mean/logvar prediction heads (block-diagonal) ----
    hh = jnp.maximum(
        jnp.dot(xh_ref[...], hw1_ref[...], preferred_element_type=f32) + hb1_ref[...], 0.0)
    head = jnp.dot(hh, hw2_ref[...], preferred_element_type=f32) + hb2_ref[...]      # (L*T, 2*d_L)

    # ---- (c) fused decode: recon (rows 0..T-1) + pred (rows T..2T-1) ----
    z = z_ref[...]                                                        # (2T, 4*d_L)
    # expand/duplicate C with a constant 0/1 matrix: cf[t, i*4dL + half*2dL + k*L + l] = C[t, i, k]
    cf = jnp.dot(c_stack, ebig_ref[...], preferred_element_type=f32)      # (2T, d_X*4*d_L)
    reps = cf.shape[1] // z.shape[1]
    hdec = cf * jnp.concatenate([z] * reps, axis=-1)                      # stay (2T,128): no reshape copies
    a = jnp.maximum(
        jnp.dot(hdec, dw0_ref[...], preferred_element_type=f32) + db0_ref[...], 0.0)
    b = jnp.dot(a, dw1_ref[...], preferred_element_type=f32) + db1_ref[...]           # no ReLU (last dim)
    dec = jnp.maximum(
        jnp.dot(b, dwf_ref[...], preferred_element_type=f32) + dbf_ref[...], 0.0)     # (2T, d_X)

    # ---- (d) assemble the whole lane-dense slab in vregs; ONE unmasked store ----
    rows = out_ref.shape[0]
    used = c_stack.shape[1] + head.shape[1] + dec.shape[1]
    pad = jnp.zeros((rows, out_ref.shape[1] - used), f32)
    out_ref[...] = jnp.concatenate([c_stack, head, dec, pad], axis=-1)


# ==================== jitted wrapper ====================

@jax.jit
def forward(packed, latent_mean, latent_logvar, t):
    L, T, K = latent_mean.shape

    # prediction-head fused input: cols 0:d_L = mean features, cols d_L:2d_L = logvar features
    xh = jnp.concatenate(
        [latent_mean.reshape(L * T, K), latent_logvar.reshape(L * T, K)], axis=-1)   # (L*T, 2*d_L)

    # time-lag shifted latents for the "pred" decode
    zeros = jnp.zeros_like(latent_mean[:, :1, :])
    lm_prev = jnp.concatenate([zeros, latent_mean[:, :-1, :]], axis=1)
    lv_prev = jnp.concatenate([zeros, latent_logvar[:, :-1, :]], axis=1)

    # layout plumbing (pure rearrangement, tiny, under the same jit):
    #   Z[t, k*L + l] = mean[l, t, k]  (first 2*d_L cols), then the logvar half.
    def z_of(m, v):
        zm = jnp.transpose(m, (1, 2, 0)).reshape(T, K * L)
        zv = jnp.transpose(v, (1, 2, 0)).reshape(T, K * L)
        return jnp.concatenate([zm, zv], axis=-1)                                    # (T, 4*d_L)

    z_all = jnp.concatenate(
        [z_of(latent_mean, latent_logvar), z_of(lm_prev, lv_prev)], axis=0)          # (2T, 4*d_L)

    slab = pl.pallas_call(
        _fused_kernel,
        out_shape=jax.ShapeDtypeStruct((2 * T, SLAB_W), jnp.float32),
    )(t, xh, z_all, packed["e_big"],
      *packed["adj"], *packed["head"], *packed["dec"])

    cw = D_X * D_L
    Ct = slab[0:T, 0:cw].reshape(T, D_X, D_L)
    Ct_1 = slab[T:2 * T, 0:cw].reshape(T, D_X, D_L)
    lm_pred = slab[:, cw:cw + D_L].reshape(L, T, D_L)
    lv_pred = slab[:, cw + D_L:cw + 2 * D_L].reshape(L, T, D_L)
    recon = slab[0:T, cw + 2 * D_L:cw + 2 * D_L + D_X]
    pred = slab[T:2 * T, cw + 2 * D_L:cw + 2 * D_L + D_X]
    return recon, pred, lm_pred, lv_pred, Ct, Ct_1


# ==================== parameter init (original layout) + one-time packing ====================

def init_params(key):
    keys = iter(jax.random.split(key, 64))

    def w(shape, scale):
        return jax.random.normal(next(keys), shape, jnp.float32) * jnp.float32(scale)

    def adj_params():
        h = D_L
        nh = N_MLP_LAYERS - 1
        return (
            w((1, h), 1.0),                   # Linear(1, d_L) weight (row vector)
            w((1, h), 0.1),
            w((nh, h, h), h ** -0.5),         # hidden Linear(d_L, d_L) stack
            w((nh, 1, h), 0.1),
            w((h, D_X * D_L), h ** -0.5),     # Linear(d_L, d_L*d_X)
            w((1, D_X * D_L), 0.1),
        )

    def head_params():
        return (
            w((D_L, FE_HIDDEN), D_L ** -0.5),
            w((1, FE_HIDDEN), 0.1),
            w((FE_HIDDEN, D_L), FE_HIDDEN ** -0.5),
            w((1, D_L), 0.1),
        )

    d_in = 4 * D_L
    d0, d1 = DECODER_LAYER_DIMS
    l2m = (
        w((D_X, d_in, d0), d_in ** -0.5),     # Linear(4*d_L, d0) per output channel
        w((D_X, d0), 0.1),
        w((D_X, d0, d1), d0 ** -0.5),         # Linear(d0, d1) (no ReLU after: last decoder dim)
        w((D_X, d1), 0.1),
        w((D_X, 1, d1), d1 ** -0.5),          # Linear(d1, 1) weight, stored transposed
        w((D_X, 1), 0.1),
    )
    return {"curr_adj": adj_params(), "pre_adj": adj_params(),
            "mean_out": head_params(), "logvar_out": head_params(), "l2m": l2m}


def _block_diag(mats):
    rows = sum(m.shape[0] for m in mats)
    cols = sum(m.shape[1] for m in mats)
    out = jnp.zeros((rows, cols), mats[0].dtype)
    r = c = 0
    for m in mats:
        out = out.at[r:r + m.shape[0], c:c + m.shape[1]].set(m)
        r += m.shape[0]
        c += m.shape[1]
    return out


def pack_params(p):
    """One-time (outside jit) packing of the original-layout params into fused block-diagonal weights."""
    def adj_pack(pc, pp):
        wi_c, bi_c, wh_c, bh_c, wo_c, bo_c = pc
        wi_p, bi_p, wh_p, bh_p, wo_p, bo_p = pp
        nh = wh_c.shape[0]
        aw_hid = jnp.stack([_block_diag([wh_c[j], wh_p[j]]) for j in range(nh)])
        ab_hid = jnp.stack([jnp.concatenate([bh_c[j], bh_p[j]], axis=-1) for j in range(nh)])
        return (jnp.concatenate([wi_c, wi_p], axis=-1),
                jnp.concatenate([bi_c, bi_p], axis=-1),
                aw_hid, ab_hid,
                _block_diag([wo_c, wo_p]),
                jnp.concatenate([bo_c, bo_p], axis=-1))

    def head_pack(pm, pv):
        w1m, b1m, w2m, b2m = pm
        w1v, b1v, w2v, b2v = pv
        return (_block_diag([w1m, w1v]), jnp.concatenate([b1m, b1v], axis=-1),
                _block_diag([w2m, w2v]), jnp.concatenate([b2m, b2v], axis=-1))

    w0, b0, w1, b1, wfT, bf = p["l2m"]
    d1 = w1.shape[-1]
    dw0 = _block_diag([w0[i] for i in range(D_X)])                 # (D_X*4*d_L, D_X*d0)
    db0 = b0.reshape(1, -1)
    dw1 = _block_diag([w1[i] for i in range(D_X)])                 # (D_X*d0, D_X*d1)
    db1 = b1.reshape(1, -1)
    dwf = jnp.zeros((D_X * d1, D_X), jnp.float32)                  # (D_X*d1, D_X)
    for i in range(D_X):
        dwf = dwf.at[i * d1:(i + 1) * d1, i].set(wfT[i, 0, :])
    dbf = bf.reshape(1, -1)

    # constant 0/1 expansion matrix: cf[t, i*4dL + half*2dL + k*L + l] = C_flat[t, i*dL + k]
    E = np.zeros((D_X * D_L, D_X * 4 * D_L), np.float32)
    for i in range(D_X):
        for k in range(D_L):
            for l in range(L_DIM):
                E[i * D_L + k, i * 4 * D_L + k * L_DIM + l] = 1.0
                E[i * D_L + k, i * 4 * D_L + 2 * D_L + k * L_DIM + l] = 1.0

    return {
        "adj": adj_pack(p["curr_adj"], p["pre_adj"]),
        "head": head_pack(p["mean_out"], p["logvar_out"]),
        "dec": (dw0, db0, dw1, db1, dwf, dbf),
        "e_big": jnp.asarray(E),
    }


# ==================== pure-JAX reference (mirrors the PyTorch forward) ====================

def reference_forward(params, latent_mean, latent_logvar, t):
    def lrelu(x):
        return jnp.where(x > 0, x, LRELU * x)

    def adj(p):
        w_in, b_in, w_hid, b_hid, w_out, b_out = p
        h = lrelu(t * w_in + b_in)
        for j in range(w_hid.shape[0]):
            h = lrelu(h @ w_hid[j] + b_hid[j])
        return jax.nn.sigmoid(h @ w_out + b_out)

    Ct = adj(params["curr_adj"]).reshape(-1, D_X, D_L)
    Ct_1 = adj(params["pre_adj"]).reshape(-1, D_X, D_L)

    def head(x, p):
        w1, b1, w2, b2 = p
        return jnp.maximum(x @ w1 + b1, 0.0) @ w2 + b2

    def dec(m, v, C):
        lm = jnp.einsum("ijk,lik->lijk", C, m).transpose(1, 2, 3, 0).reshape(m.shape[1], D_X, -1)
        lv = jnp.einsum("ijk,lik->lijk", C, v).transpose(1, 2, 3, 0).reshape(v.shape[1], D_X, -1)
        h = jnp.concatenate([lm, lv], axis=-1)
        w0, b0, w1, b1, wfT, bf = params["l2m"]
        outs = []
        for i in range(D_X):
            z = h[:, i, :]
            a = jnp.maximum(z @ w0[i] + b0[i], 0.0)
            a = a @ w1[i] + b1[i]
            o = a @ wfT[i].T + bf[i]
            outs.append(jnp.maximum(o, 0.0))
        return jnp.concatenate(outs, axis=1)

    zeros = jnp.zeros_like(latent_mean[:, 0:1, :])
    mean_prev = jnp.concatenate([zeros, latent_mean[:, :-1, :]], axis=1)
    logvar_prev = jnp.concatenate([zeros, latent_logvar[:, :-1, :]], axis=1)

    recon = dec(latent_mean, latent_logvar, Ct)
    pred = dec(mean_prev, logvar_prev, Ct_1)
    lm_pred = head(latent_mean, params["mean_out"])
    lv_pred = head(latent_logvar, params["logvar_out"])
    return recon, pred, lm_pred, lv_pred, Ct, Ct_1


# ==================== main ====================

if __name__ == "__main__":
    key = jax.random.PRNGKey(0)
    kp, km, kv = jax.random.split(key, 3)
    params = init_params(kp)
    packed = pack_params(params)        # one-time weight packing, outside jit

    latent_mean = jax.random.normal(km, (L_DIM, T_LEN, D_L), jnp.float32)
    latent_logvar = jax.random.normal(kv, (L_DIM, T_LEN, D_L), jnp.float32)
    t = jnp.arange(1, T_LEN + 1, dtype=jnp.float32).reshape(T_LEN, 1)

    outs = jax.block_until_ready(forward(packed, latent_mean, latent_logvar, t))
    refs = reference_forward(params, latent_mean, latent_logvar, t)

    names = ("recon", "pred", "lm_pred", "lv_pred", "Ct", "Ct_1")
    for name, o, r in zip(names, outs, refs):
        assert o.shape == r.shape, (name, o.shape, r.shape)
        assert jnp.allclose(o, r, atol=1e-3, rtol=1e-3), (name, float(jnp.max(jnp.abs(o - r))))

    print("KERNEL_OK")
</pallas_src>

<mosaic_0001>
module attributes {stable_mosaic.version = 11 : i64} {
  func.func @_fused_kernel(%arg0: memref<8x1xf32, #tpu.memory_space<vmem>>, %arg1: memref<16x16xf32, #tpu.memory_space<vmem>>, %arg2: memref<16x32xf32, #tpu.memory_space<vmem>>, %arg3: memref<32x128xf32, #tpu.memory_space<vmem>>, %arg4: memref<1x16xf32, #tpu.memory_space<vmem>>, %arg5: memref<1x16xf32, #tpu.memory_space<vmem>>, %arg6: memref<1x16x16xf32, #tpu.memory_space<vmem>>, %arg7: memref<1x1x16xf32, #tpu.memory_space<vmem>>, %arg8: memref<16x64xf32, #tpu.memory_space<vmem>>, %arg9: memref<1x64xf32, #tpu.memory_space<vmem>>, %arg10: memref<16x256xf32, #tpu.memory_space<vmem>>, %arg11: memref<1x256xf32, #tpu.memory_space<vmem>>, %arg12: memref<256x16xf32, #tpu.memory_space<vmem>>, %arg13: memref<1x16xf32, #tpu.memory_space<vmem>>, %arg14: memref<128x128xf32, #tpu.memory_space<vmem>>, %arg15: memref<1x128xf32, #tpu.memory_space<vmem>>, %arg16: memref<128x128xf32, #tpu.memory_space<vmem>>, %arg17: memref<1x128xf32, #tpu.memory_space<vmem>>, %arg18: memref<128x4xf32, #tpu.memory_space<vmem>>, %arg19: memref<1x4xf32, #tpu.memory_space<vmem>>, %arg20: memref<16x128xf32, #tpu.memory_space<vmem>>) attributes {dimension_semantics = [], scalar_prefetch = 0 : i64, scratch_operands = 0 : i64, tpu.core_type = #tpu.core_type<tc>} {
    %c0 = arith.constant 0 : index
    %c0_0 = arith.constant 0 : index
    %0 = vector.load %arg0[%c0, %c0_0] : memref<8x1xf32, #tpu.memory_space<vmem>>, vector<8x1xf32>
    %c0_1 = arith.constant 0 : index
    %c0_2 = arith.constant 0 : index
    %1 = vector.load %arg4[%c0_1, %c0_2] : memref<1x16xf32, #tpu.memory_space<vmem>>, vector<1x16xf32>
    %2 = vector.broadcast %0 : vector<8x1xf32> to vector<8x16xf32>
    %3 = vector.broadcast %1 : vector<1x16xf32> to vector<8x16xf32>
    %4 = arith.mulf %2, %3 : vector<8x16xf32>
    %c0_3 = arith.constant 0 : index
    %c0_4 = arith.constant 0 : index
    %5 = vector.load %arg5[%c0_3, %c0_4] : memref<1x16xf32, #tpu.memory_space<vmem>>, vector<1x16xf32>
    %6 = vector.broadcast %5 : vector<1x16xf32> to vector<8x16xf32>
    %7 = arith.addf %4, %6 : vector<8x16xf32>
    %cst = arith.constant 0.000000e+00 : f32
    %8 = vector.broadcast %cst : f32 to vector<8x16xf32>
    %9 = arith.cmpf ogt, %7, %8 : vector<8x16xf32>
    %cst_5 = arith.constant 0.00999999977 : f32
    %10 = vector.broadcast %cst_5 : f32 to vector<8x16xf32>
    %11 = arith.mulf %10, %7 : vector<8x16xf32>
    %12 = arith.select %9, %7, %11 : vector<8x16xi1>, vector<8x16xf32>
    %c0_6 = arith.constant 0 : index
    %c0_7 = arith.constant 0 : index
    %c0_8 = arith.constant 0 : index
    %13 = vector.load %arg6[%c0_6, %c0_7, %c0_8] : memref<1x16x16xf32, #tpu.memory_space<vmem>>, vector<1x16x16xf32>
    %14 = vector.shape_cast %13 : vector<1x16x16xf32> to vector<16x16xf32>
    %cst_9 = arith.constant dense<0.000000e+00> : vector<8x16xf32>
    %15 = tpu.matmul %12, %14, %cst_9 {dimension_numbers = #tpu.dot_dimension_numbers<[1], [0], [0], [1], [0, 0, 1, 1], [], []>} : vector<8x16xf32>, vector<16x16xf32>, vector<8x16xf32> -> vector<8x16xf32>
    %c0_10 = arith.constant 0 : index
    %c0_11 = arith.constant 0 : index
    %c0_12 = arith.constant 0 : index
    %16 = vector.load %arg7[%c0_10, %c0_11, %c0_12] : memref<1x1x16xf32, #tpu.memory_space<vmem>>, vector<1x1x16xf32>
    %17 = vector.shape_cast %16 : vector<1x1x16xf32> to vector<1x16xf32>
    %18 = vector.broadcast %17 : vector<1x16xf32> to vector<8x16xf32>
    %19 = arith.addf %15, %18 : vector<8x16xf32>
    %cst_13 = arith.constant 0.000000e+00 : f32
    %20 = vector.broadcast %cst_13 : f32 to vector<8x16xf32>
    %21 = arith.cmpf ogt, %19, %20 : vector<8x16xf32>
    %cst_14 = arith.constant 0.00999999977 : f32
    %22 = vector.broadcast %cst_14 : f32 to vector<8x16xf32>
    %23 = arith.mulf %22, %19 : vector<8x16xf32>
    %24 = arith.select %21, %19, %23 : vector<8x16xi1>, vector<8x16xf32>
    %c0_15 = arith.constant 0 : index
    %c0_16 = arith.constant 0 : index
    %25 = vector.load %arg8[%c0_15, %c0_16] : memref<16x64xf32, #tpu.memory_space<vmem>>, vector<16x64xf32>
    %cst_17 = arith.constant dense<0.000000e+00> : vector<8x64xf32>
    %26 = tpu.matmul %24, %25, %cst_17 {dimension_numbers = #tpu.dot_dimension_numbers<[1], [0], [0], [1], [0, 0, 1, 1], [], []>} : vector<8x16xf32>, vector<16x64xf32>, vector<8x64xf32> -> vector<8x64xf32>
    %c0_18 = arith.constant 0 : index
    %c0_19 = arith.constant 0 : index
    %27 = vector.load %arg9[%c0_18, %c0_19] : memref<1x64xf32, #tpu.memory_space<vmem>>, vector<1x64xf32>
    %28 = vector.broadcast %27 : vector<1x64xf32> to vector<8x64xf32>
    %29 = arith.addf %26, %28 : vector<8x64xf32>
    %30 = arith.negf %29 : vector<8x64xf32>
    %31 = math.exp %30 : vector<8x64xf32>
    %cst_20 = arith.constant 1.000000e+00 : f32
    %32 = vector.broadcast %cst_20 : f32 to vector<8x64xf32>
    %33 = arith.addf %32, %31 : vector<8x64xf32>
    %34 = arith.divf %32, %33 : vector<8x64xf32>
    %35 = vector.extract_strided_slice %34 {offsets = [0, 0], sizes = [8, 32], strides = [1, 1]} : vector<8x64xf32> to vector<8x32xf32>
    %36 = vector.extract_strided_slice %34 {offsets = [0, 32], sizes = [8, 32], strides = [1, 1]} : vector<8x64xf32> to vector<8x32xf32>
    %37 = tpu.concatenate %35, %36 in 0 : vector<8x32xf32>, vector<8x32xf32> -> vector<16x32xf32>
    %c0_21 = arith.constant 0 : index
    %c0_22 = arith.constant 0 : index
    %38 = vector.load %arg1[%c0_21, %c0_22] : memref<16x16xf32, #tpu.memory_space<vmem>>, vector<16x16xf32>
    %c0_23 = arith.constant 0 : index
    %c0_24 = arith.constant 0 : index
    %39 = vector.load %arg10[%c0_23, %c0_24] : memref<16x256xf32, #tpu.memory_space<vmem>>, vector<16x256xf32>
    %cst_25 = arith.constant dense<0.000000e+00> : vector<16x256xf32>
    %40 = tpu.matmul %38, %39, %cst_25 {dimension_numbers = #tpu.dot_dimension_numbers<[1], [0], [0], [1], [0, 0, 1, 1], [], []>} : vector<16x16xf32>, vector<16x256xf32>, vector<16x256xf32> -> vector<16x256xf32>
    %c0_26 = arith.constant 0 : index
    %c0_27 = arith.constant 0 : index
    %41 = vector.load %arg11[%c0_26, %c0_27] : memref<1x256xf32, #tpu.memory_space<vmem>>, vector<1x256xf32>
    %42 = vector.broadcast %41 : vector<1x256xf32> to vector<16x256xf32>
    %43 = arith.addf %40, %42 : vector<16x256xf32>
    %cst_28 = arith.constant 0.000000e+00 : f32
    %44 = vector.broadcast %cst_28 : f32 to vector<16x256xf32>
    %45 = arith.maximumf %43, %44 : vector<16x256xf32>
    %c0_29 = arith.constant 0 : index
    %c0_30 = arith.constant 0 : index
    %46 = vector.load %arg12[%c0_29, %c0_30] : memref<256x16xf32, #tpu.memory_space<vmem>>, vector<256x16xf32>
    %cst_31 = arith.constant dense<0.000000e+00> : vector<16x16xf32>
    %47 = tpu.matmul %45, %46, %cst_31 {dimension_numbers = #tpu.dot_dimension_numbers<[1], [0], [0], [1], [0, 0, 1, 1], [], []>} : vector<16x256xf32>, vector<256x16xf32>, vector<16x16xf32> -> vector<16x16xf32>
    %c0_32 = arith.constant 0 : index
    %c0_33 = arith.constant 0 : index
    %48 = vector.load %arg13[%c0_32, %c0_33] : memref<1x16xf32, #tpu.memory_space<vmem>>, vector<1x16xf32>
    %49 = vector.broadcast %48 : vector<1x16xf32> to vector<16x16xf32>
    %50 = arith.addf %47, %49 : vector<16x16xf32>
    %c0_34 = arith.constant 0 : index
    %c0_35 = arith.constant 0 : index
    %51 = vector.load %arg2[%c0_34, %c0_35] : memref<16x32xf32, #tpu.memory_space<vmem>>, vector<16x32xf32>
    %c0_36 = arith.constant 0 : index
    %c0_37 = arith.constant 0 : index
    %52 = vector.load %arg3[%c0_36, %c0_37] : memref<32x128xf32, #tpu.memory_space<vmem>>, vector<32x128xf32>
    %cst_38 = arith.constant dense<0.000000e+00> : vector<16x128xf32>
    %53 = tpu.matmul %37, %52, %cst_38 {dimension_numbers = #tpu.dot_dimension_numbers<[1], [0], [0], [1], [0, 0, 1, 1], [], []>} : vector<16x32xf32>, vector<32x128xf32>, vector<16x128xf32> -> vector<16x128xf32>
    %54 = tpu.concatenate %51, %51, %51, %51 in 1 : vector<16x32xf32>, vector<16x32xf32>, vector<16x32xf32>, vector<16x32xf32> -> vector<16x128xf32>
    %55 = arith.mulf %53, %54 : vector<16x128xf32>
    %c0_39 = arith.constant 0 : index
    %c0_40 = arith.constant 0 : index
    %56 = vector.load %arg14[%c0_39, %c0_40] : memref<128x128xf32, #tpu.memory_space<vmem>>, vector<128x128xf32>
    %cst_41 = arith.constant dense<0.000000e+00> : vector<16x128xf32>
    %57 = tpu.matmul %55, %56, %cst_41 {dimension_numbers = #tpu.dot_dimension_numbers<[1], [0], [0], [1], [0, 0, 1, 1], [], []>} : vector<16x128xf32>, vector<128x128xf32>, vector<16x128xf32> -> vector<16x128xf32>
    %c0_42 = arith.constant 0 : index
    %c0_43 = arith.constant 0 : index
    %58 = vector.load %arg15[%c0_42, %c0_43] : memref<1x128xf32, #tpu.memory_space<vmem>>, vector<1x128xf32>
    %59 = vector.broadcast %58 : vector<1x128xf32> to vector<16x128xf32>
    %60 = arith.addf %57, %59 : vector<16x128xf32>
    %cst_44 = arith.constant 0.000000e+00 : f32
    %61 = vector.broadcast %cst_44 : f32 to vector<16x128xf32>
    %62 = arith.maximumf %60, %61 : vector<16x128xf32>
    %c0_45 = arith.constant 0 : index
    %c0_46 = arith.constant 0 : index
    %63 = vector.load %arg16[%c0_45, %c0_46] : memref<128x128xf32, #tpu.memory_space<vmem>>, vector<128x128xf32>
    %cst_47 = arith.constant dense<0.000000e+00> : vector<16x128xf32>
    %64 = tpu.matmul %62, %63, %cst_47 {dimension_numbers = #tpu.dot_dimension_numbers<[1], [0], [0], [1], [0, 0, 1, 1], [], []>} : vector<16x128xf32>, vector<128x128xf32>, vector<16x128xf32> -> vector<16x128xf32>
    %c0_48 = arith.constant 0 : index
    %c0_49 = arith.constant 0 : index
    %65 = vector.load %arg17[%c0_48, %c0_49] : memref<1x128xf32, #tpu.memory_space<vmem>>, vector<1x128xf32>
    %66 = vector.broadcast %65 : vector<1x128xf32> to vector<16x128xf32>
    %67 = arith.addf %64, %66 : vector<16x128xf32>
    %c0_50 = arith.constant 0 : index
    %c0_51 = arith.constant 0 : index
    %68 = vector.load %arg18[%c0_50, %c0_51] : memref<128x4xf32, #tpu.memory_space<vmem>>, vector<128x4xf32>
    %cst_52 = arith.constant dense<0.000000e+00> : vector<16x4xf32>
    %69 = tpu.matmul %67, %68, %cst_52 {dimension_numbers = #tpu.dot_dimension_numbers<[1], [0], [0], [1], [0, 0, 1, 1], [], []>} : vector<16x128xf32>, vector<128x4xf32>, vector<16x4xf32> -> vector<16x4xf32>
    %c0_53 = arith.constant 0 : index
    %c0_54 = arith.constant 0 : index
    %70 = vector.load %arg19[%c0_53, %c0_54] : memref<1x4xf32, #tpu.memory_space<vmem>>, vector<1x4xf32>
    %71 = vector.broadcast %70 : vector<1x4xf32> to vector<16x4xf32>
    %72 = arith.addf %69, %71 : vector<16x4xf32>
    %cst_55 = arith.constant 0.000000e+00 : f32
    %73 = vector.broadcast %cst_55 : f32 to vector<16x4xf32>
    %74 = arith.maximumf %72, %73 : vector<16x4xf32>
    %cst_56 = arith.constant 0.000000e+00 : f32
    %75 = vector.broadcast %cst_56 : f32 to vector<16x76xf32>
    %76 = tpu.concatenate %37, %50, %74, %75 in 1 : vector<16x32xf32>, vector<16x16xf32>, vector<16x4xf32>, vector<16x76xf32> -> vector<16x128xf32>
    %c0_57 = arith.constant 0 : index
    %c0_58 = arith.constant 0 : index
    %77 = vector.load %arg20[%c0_57, %c0_58] : memref<16x128xf32, #tpu.memory_space<vmem>>, vector<16x128xf32>
    tpu.vector_store %arg20[%c0_57, %c0_58], %76 {strides = array<i32>} : memref<16x128xf32, #tpu.memory_space<vmem>>, vector<16x128xf32>,
    return
  }
}

</mosaic_0001>

<llo_original>
// kernel: forward.1
$region0: #{forward.1}
  #allocation0 [shape = 'u32[]', space=smem, size = 0x4, offset = 0x4, fixed_abs, tag = 'smem constant byte address 0x4 - core index']
  #allocation1 [shape = 'u32[72,128]{1,0:T(1,128)}', space=vmem, size = 0x9000, scoped, tag = 'internal scratch']
  %s0 = inlined_call_operand.vmem [shape: f32[8,1], index: 0, kind: input, shape index: {}]
  %s1 = inlined_call_operand.vmem [shape: f32[16,16], index: 1, kind: input, shape index: {}]
  %s2 = inlined_call_operand.vmem [shape: f32[16,32], index: 2, kind: input, shape index: {}]
  %s3 = inlined_call_operand.vmem [shape: f32[32,128], index: 3, kind: input, shape index: {}]
  %s4 = inlined_call_operand.vmem [shape: f32[1,16], index: 4, kind: input, shape index: {}]
  %s5 = inlined_call_operand.vmem [shape: f32[1,16], index: 5, kind: input, shape index: {}]
  %s6 = inlined_call_operand.vmem [shape: f32[1,16,16], index: 6, kind: input, shape index: {}]
  %s7 = inlined_call_operand.vmem [shape: f32[1,1,16], index: 7, kind: input, shape index: {}]
  %s8 = inlined_call_operand.vmem [shape: f32[16,64], index: 8, kind: input, shape index: {}]
  %s9 = inlined_call_operand.vmem [shape: f32[1,64], index: 9, kind: input, shape index: {}]
  %s10 = inlined_call_operand.vmem [shape: f32[16,256], index: 10, kind: input, shape index: {}]
  %s11 = inlined_call_operand.vmem [shape: f32[1,256], index: 11, kind: input, shape index: {}]
  %s12 = inlined_call_operand.vmem [shape: f32[256,16], index: 12, kind: input, shape index: {}]
  %s13 = inlined_call_operand.vmem [shape: f32[1,16], index: 13, kind: input, shape index: {}]
  %s14 = inlined_call_operand.vmem [shape: f32[128,128], index: 14, kind: input, shape index: {}]
  %s15 = inlined_call_operand.vmem [shape: f32[1,128], index: 15, kind: input, shape index: {}]
  %s16 = inlined_call_operand.vmem [shape: f32[128,128], index: 16, kind: input, shape index: {}]
  %s17 = inlined_call_operand.vmem [shape: f32[1,128], index: 17, kind: input, shape index: {}]
  %s18 = inlined_call_operand.vmem [shape: f32[128,4], index: 18, kind: input, shape index: {}]
  %s19 = inlined_call_operand.vmem [shape: f32[1,4], index: 19, kind: input, shape index: {}]
  %s20 = inlined_call_operand.vmem [shape: f32[16,128], index: 20, kind: output, shape index: {}]
  %s21 = sld [smem:[#allocation0]]
  $region90: #{forward.1} parent=0
    _
  %s23 = ssub.s32 1, %s21
  %s24 = scalar_select 0, %s23, %s21
  // Predicated region
  $region2: #{forward.1} parent=0 // pred_check
    _
  $region3: #{forward.1} parent=0 // pred_check_branch
    %26 = sbr.rel (0) target = $region5
  $region4: #{forward.1} parent=0 // pred_region
    _
  $region5: #{forward.1} parent=0 // pred_fallthru
    _
  // Predicated region
  $region6: #{forward.1} parent=0 // pred_check
    _
  $region7: #{forward.1} parent=0 // pred_check_branch
    %28 = sbr.rel (0) target = $region9
  $region8: #{forward.1} parent=0 // pred_region
    _
  $region9: #{forward.1} parent=0 // pred_fallthru
    _
  // Predicated region
  $region10: #{forward.1} parent=0 // pred_check
    _
  $region11: #{forward.1} parent=0 // pred_check_branch
    %30 = sbr.rel (0) target = $region13
  $region12: #{forward.1} parent=0 // pred_region
    _
  $region13: #{forward.1} parent=0 // pred_fallthru
    _
  // Predicated region
  $region14: #{forward.1} parent=0 // pred_check
    _
  $region15: #{forward.1} parent=0 // pred_check_branch
    %32 = sbr.rel (0) target = $region17
  $region16: #{forward.1} parent=0 // pred_region
    _
  $region17: #{forward.1} parent=0 // pred_fallthru
    _
  // Predicated region
  $region18: #{forward.1} parent=0 // pred_check
    _
  $region19: #{forward.1} parent=0 // pred_check_branch
    %34 = sbr.rel (0) target = $region21
  $region20: #{forward.1} parent=0 // pred_region
    _
  $region21: #{forward.1} parent=0 // pred_fallthru
    _
  // Predicated region
  $region22: #{forward.1} parent=0 // pred_check
    _
  $region23: #{forward.1} parent=0 // pred_check_branch
    %36 = sbr.rel (0) target = $region25
  $region24: #{forward.1} parent=0 // pred_region
    _
  $region25: #{forward.1} parent=0 // pred_fallthru
    _
  // Predicated region
  $region26: #{forward.1} parent=0 // pred_check
    _
  $region27: #{forward.1} parent=0 // pred_check_branch
    %38 = sbr.rel (0) target = $region29
  $region28: #{forward.1} parent=0 // pred_region
    _
  $region29: #{forward.1} parent=0 // pred_fallthru
    _
  // Predicated region
  $region30: #{forward.1} parent=0 // pred_check
    _
  $region31: #{forward.1} parent=0 // pred_check_branch
    %40 = sbr.rel (0) target = $region33
  $region32: #{forward.1} parent=0 // pred_region
    _
  $region33: #{forward.1} parent=0 // pred_fallthru
    _
  // Predicated region
  $region34: #{forward.1} parent=0 // pred_check
    _
  $region35: #{forward.1} parent=0 // pred_check_branch
    %42 = sbr.rel (0) target = $region37
  $region36: #{forward.1} parent=0 // pred_region
    _
  $region37: #{forward.1} parent=0 // pred_fallthru
    _
  // Predicated region
  $region38: #{forward.1} parent=0 // pred_check
    _
  $region39: #{forward.1} parent=0 // pred_check_branch
    %44 = sbr.rel (0) target = $region41
  $region40: #{forward.1} parent=0 // pred_region
    _
  $region41: #{forward.1} parent=0 // pred_fallthru
    _
  // Predicated region
  $region42: #{forward.1} parent=0 // pred_check
    _
  $region43: #{forward.1} parent=0 // pred_check_branch
    %46 = sbr.rel (0) target = $region45
  $region44: #{forward.1} parent=0 // pred_region
    _
  $region45: #{forward.1} parent=0 // pred_fallthru
    _
  // Predicated region
  $region46: #{forward.1} parent=0 // pred_check
    _
  $region47: #{forward.1} parent=0 // pred_check_branch
    %48 = sbr.rel (0) target = $region49
  $region48: #{forward.1} parent=0 // pred_region
    _
  $region49: #{forward.1} parent=0 // pred_fallthru
    _
  // Predicated region
  $region50: #{forward.1} parent=0 // pred_check
    _
  $region51: #{forward.1} parent=0 // pred_check_branch
    %50 = sbr.rel (0) target = $region53
  $region52: #{forward.1} parent=0 // pred_region
    _
  $region53: #{forward.1} parent=0 // pred_fallthru
    _
  // Predicated region
  $region54: #{forward.1} parent=0 // pred_check
    _
  $region55: #{forward.1} parent=0 // pred_check_branch
    %52 = sbr.rel (0) target = $region57
  $region56: #{forward.1} parent=0 // pred_region
    _
  $region57: #{forward.1} parent=0 // pred_fallthru
    _
  // Predicated region
  $region58: #{forward.1} parent=0 // pred_check
    _
  $region59: #{forward.1} parent=0 // pred_check_branch
    %54 = sbr.rel (0) target = $region61
  $region60: #{forward.1} parent=0 // pred_region
    _
  $region61: #{forward.1} parent=0 // pred_fallthru
    _
  // Predicated region
  $region62: #{forward.1} parent=0 // pred_check
    _
  $region63: #{forward.1} parent=0 // pred_check_branch
    %56 = sbr.rel (0) target = $region65
  $region64: #{forward.1} parent=0 // pred_region
    _
  $region65: #{forward.1} parent=0 // pred_fallthru
    _
  // Predicated region
  $region66: #{forward.1} parent=0 // pred_check
    _
  $region67: #{forward.1} parent=0 // pred_check_branch
    %58 = sbr.rel (0) target = $region69
  $region68: #{forward.1} parent=0 // pred_region
    _
  $region69: #{forward.1} parent=0 // pred_fallthru
    _
  // Predicated region
  $region70: #{forward.1} parent=0 // pred_check
    _
  $region71: #{forward.1} parent=0 // pred_check_branch
    %60 = sbr.rel (0) target = $region73
  $region72: #{forward.1} parent=0 // pred_region
    _
  $region73: #{forward.1} parent=0 // pred_fallthru
    _
  // Predicated region
  $region74: #{forward.1} parent=0 // pred_check
    _
  $region75: #{forward.1} parent=0 // pred_check_branch
    %62 = sbr.rel (0) target = $region77
  $region76: #{forward.1} parent=0 // pred_region
    _
  $region77: #{forward.1} parent=0 // pred_fallthru
    _
  // Predicated region
  $region78: #{forward.1} parent=0 // pred_check
    _
  $region79: #{forward.1} parent=0 // pred_check_branch
    %64 = sbr.rel (0) target = $region81
  $region80: #{forward.1} parent=0 // pred_region
    _
  $region81: #{forward.1} parent=0 // pred_fallthru
    _
  %v65 = vld [vmem:[%s0] sm:$0xff]
  %v66 = vld [vmem:[%s4] sm:$0x1]
  %68 = vset.pattern.permute.xlu0 0
  %69 = vperm.xlu0 %68, %v65
  %v70 = vpop.permute.xlu0 %69
  %v73 = vperm.slane %v66, 0
  %v75 = vmul.f32 %v70, %v73
  %v76 = vld [vmem:[%s5] sm:$0x1]
  %v78 = vperm.slane %v76, 0
  %v80 = vadd.f32 %v75, %v78
  %vm81 = vcmp.gt.f32.partialorder %v80, 0.0
  %v82 = vmul.f32 %v80, 0.01
  %v83 = vsel %vm81, %v80, %v82
  %v84 = vld [vmem:[%s6] sm:$0xff]
  %v85 = vld [vmem:[%s6 + $0x8] sm:$0xff]
  %v86 = vld [vmem:[%s7] sm:$0x1]
  %v88 = vperm.slane %v86, 0
  %vm90 = vcmask 130048
  %v92 = vsel %vm90, %v83, 0
  %94 = vmatpush.msra.mxu0 0.0
  %95 = vmatpush.msra.mxu0 0.0
  %96 = vmatpush.msra.mxu0 0.0
  %97 = vmatpush.msra.mxu0 0.0
  %98 = vmatpush.msra.mxu0 0.0
  %99 = vmatpush.msra.mxu0 0.0
  %100 = vmatpush.msra.mxu0 0.0
  %101 = vmatpush.msra.mxu0 0.0
  %102 = vmatpush.msra.mxu0 0.0
  %103 = vmatpush.msra.mxu0 0.0
  %104 = vmatpush.msra.mxu0 0.0
  %105 = vmatpush.msra.mxu0 0.0
  %106 = vmatpush.msra.mxu0 0.0
  %107 = vmatpush.msra.mxu0 0.0
  %108 = vmatpush.msra.mxu0 %v85
  %109 = vmatpush.msra.mxu0 %v84
  %110 = vmatmul.f32.gmra.mxu0 %v92
  %v111 = vpop.f32.mrf.mxu0
  %v112 = vadd.f32 %v88, %v111
  %113 = vdwg.mxu0
  %vm114 = vcmp.gt.f32.partialorder %v112, 0.0
  %v115 = vmul.f32 %v112, 0.01
  %v116 = vsel %vm114, %v112, %v115
  %v117 = vld [vmem:[%s8] sm:$0xff]
  %v118 = vld [vmem:[%s8 + $0x8] sm:$0xff]
  %v119 = vld [vmem:[%s9] sm:$0x1]
  %v121 = vperm.slane %v119, 0
  %v124 = vsel %vm90, %v116, 0
  %126 = vmatpush.msra.mxu0 0.0
  %127 = vmatpush.msra.mxu0 0.0
  %128 = vmatpush.msra.mxu0 0.0
  %129 = vmatpush.msra.mxu0 0.0
  %130 = vmatpush.msra.mxu0 0.0
  %131 = vmatpush.msra.mxu0 0.0
  %132 = vmatpush.msra.mxu0 0.0
  %133 = vmatpush.msra.mxu0 0.0
  %134 = vmatpush.msra.mxu0 0.0
  %135 = vmatpush.msra.mxu0 0.0
  %136 = vmatpush.msra.mxu0 0.0
  %137 = vmatpush.msra.mxu0 0.0
  %138 = vmatpush.msra.mxu0 0.0
  %139 = vmatpush.msra.mxu0 0.0
  %140 = vmatpush.msra.mxu0 %v118
  %141 = vmatpush.msra.mxu0 %v117
  %142 = vmatmul.f32.gmra.mxu0 %v124
  %v143 = vpop.f32.mrf.mxu0
  %v144 = vadd.f32 %v121, %v143
  %145 = vdwg.mxu0
  %v146 = vxor.u32 %v144, 2147483648
  %v147 = vmul.f32 %v146, 1.442695
  %v148 = vpow.pop %v147
  %v149 = vadd.f32 %v148, 1.0
  %v150 = vrcp.pop %v149
  %v151 = vmul.f32 %v149, %v150
  %v152 = vsub.f32 1.0, %v151
  %v153 = vmul.f32 %v150, %v152
  %v154 = vadd.f32 %v150, %v153
  %vm155 = vweird.f32 %v149
  %vm156 = vweird.f32 %v150
  %vm157 = vmor %vm155, %vm156
  %v158 = vsel %vm157, %v150, %v154
  %v159 = vand.u32 2147483647, %v149
  %vm160 = vcmp.eq.f32.partialorder %v159, 8.507059e+37
  %v161 = vand.u32 %v149, 2147483648
  %v162 = vor.u32 1.1754944e-38, %v161
  %v163 = vsel %vm160, %v162, %v158
  %v164 = vmul.f32 1.0, %v163
  %166 = vrot.lane.b32.xlu0 %v164, 96
  %v167 = vpop.permute.xlu0 %166
  %v169 = vld [vmem:[%s1] sm:$0xff]
  %v170 = vld [vmem:[%s1 + $0x8] sm:$0xff]
  %v171 = vld [vmem:[%s10] sm:$0xff]
  %v172 = vld [vmem:[%s10 + $0x8] sm:$0xff]
  %v173 = vld [vmem:[%s10 + $0x10] sm:$0xff]
  %v174 = vld [vmem:[%s10 + $0x18] sm:$0xff]
  %v175 = vld [vmem:[%s11] sm:$0x3]
  %v177 = vperm.slane %v175, 0
  %v178 = vperm.slane %v175, 1
  %v182 = vsel %vm90, %v169, 0
  %v185 = vsel %vm90, %v170, 0
  %187 = vmatpush.msra.mxu0 0.0
  %188 = vmatpush.msra.mxu0 0.0
  %189 = vmatpush.msra.mxu0 0.0
  %190 = vmatpush.msra.mxu0 0.0
  %191 = vmatpush.msra.mxu0 0.0
  %192 = vmatpush.msra.mxu0 0.0
  %193 = vmatpush.msra.mxu0 0.0
  %194 = vmatpush.msra.mxu0 0.0
  %195 = vmatpush.msra.mxu0 0.0
  %196 = vmatpush.msra.mxu0 0.0
  %197 = vmatpush.msra.mxu0 0.0
  %198 = vmatpush.msra.mxu0 0.0
  %199 = vmatpush.msra.mxu0 0.0
  %200 = vmatpush.msra.mxu0 0.0
  %201 = vmatpush.msra.mxu0 %v173
  %202 = vmatpush.msra.mxu0 %v171
  %203 = vmatmul.f32.gmra.mxu0 %v182
  %v204 = vpop.f32.mrf.mxu0
  %v205 = vadd.f32 %v177, %v204
  %206 = vmatmul.f32.gmra.mxu0 %v185
  %v207 = vpop.f32.mrf.mxu0
  %v208 = vadd.f32 %v177, %v207
  %209 = vdwg.mxu0
  %210 = vmatpush.msra.mxu0 0.0
  %211 = vmatpush.msra.mxu0 0.0
  %212 = vmatpush.msra.mxu0 0.0
  %213 = vmatpush.msra.mxu0 0.0
  %214 = vmatpush.msra.mxu0 0.0
  %215 = vmatpush.msra.mxu0 0.0
  %216 = vmatpush.msra.mxu0 0.0
  %217 = vmatpush.msra.mxu0 0.0
  %218 = vmatpush.msra.mxu0 0.0
  %219 = vmatpush.msra.mxu0 0.0
  %220 = vmatpush.msra.mxu0 0.0
  %221 = vmatpush.msra.mxu0 0.0
  %222 = vmatpush.msra.mxu0 0.0
  %223 = vmatpush.msra.mxu0 0.0
  %224 = vmatpush.msra.mxu0 %v174
  %225 = vmatpush.msra.mxu0 %v172
  %226 = vmatmul.f32.gmra.mxu0 %v182
  %v227 = vpop.f32.mrf.mxu0
  %v228 = vadd.f32 %v178, %v227
  %229 = vmatmul.f32.gmra.mxu0 %v185
  %v230 = vpop.f32.mrf.mxu0
  %v231 = vadd.f32 %v178, %v230
  %232 = vdwg.mxu0
  %v233 = vmax.f32 %v205, 0.0
  %v234 = vmax.f32 %v228, 0.0
  %v235 = vmax.f32 %v208, 0.0
  %v236 = vmax.f32 %v231, 0.0
  %v237 = vld [vmem:[%s12] sm:$0xff]
  %v238 = vld [vmem:[%s12 + $0x8] sm:$0xff]
  %v239 = vld [vmem:[%s12 + $0x10] sm:$0xff]
  %v240 = vld [vmem:[%s12 + $0x18] sm:$0xff]
  %v241 = vld [vmem:[%s12 + $0x20] sm:$0xff]
  %v242 = vld [vmem:[%s12 + $0x28] sm:$0xff]
  %v243 = vld [vmem:[%s12 + $0x30] sm:$0xff]
  %v244 = vld [vmem:[%s12 + $0x38] sm:$0xff]
  %v245 = vld [vmem:[%s12 + $0x40] sm:$0xff]
  %v246 = vld [vmem:[%s12 + $0x48] sm:$0xff]
  %v247 = vld [vmem:[%s12 + $0x50] sm:$0xff]
  %v248 = vld [vmem:[%s12 + $0x58] sm:$0xff]
  %v249 = vld [vmem:[%s12 + $0x60] sm:$0xff]
  %v250 = vld [vmem:[%s12 + $0x68] sm:$0xff]
  %v251 = vld [vmem:[%s12 + $0x70] sm:$0xff]
  %v252 = vld [vmem:[%s12 + $0x78] sm:$0xff]
  %v253 = vld [vmem:[%s12 + $0x80] sm:$0xff]
  %v254 = vld [vmem:[%s12 + $0x88] sm:$0xff]
  %v255 = vld [vmem:[%s12 + $0x90] sm:$0xff]
  %v256 = vld [vmem:[%s12 + $0x98] sm:$0xff]
  %v257 = vld [vmem:[%s12 + $0xa0] sm:$0xff]
  %v258 = vld [vmem:[%s12 + $0xa8] sm:$0xff]
  %v259 = vld [vmem:[%s12 + $0xb0] sm:$0xff]
  %v260 = vld [vmem:[%s12 + $0xb8] sm:$0xff]
  %v261 = vld [vmem:[%s12 + $0xc0] sm:$0xff]
  %v262 = vld [vmem:[%s12 + $0xc8] sm:$0xff]
  %v263 = vld [vmem:[%s12 + $0xd0] sm:$0xff]
  %v264 = vld [vmem:[%s12 + $0xd8] sm:$0xff]
  %v265 = vld [vmem:[%s12 + $0xe0] sm:$0xff]
  %v266 = vld [vmem:[%s12 + $0xe8] sm:$0xff]
  %v267 = vld [vmem:[%s12 + $0xf0] sm:$0xff]
  %v268 = vld [vmem:[%s12 + $0xf8] sm:$0xff]
  %v269 = vld [vmem:[%s13] sm:$0x1]
  %v271 = vperm.slane %v269, 0
  %273 = vmatpush.msra.mxu0 %v252
  %274 = vmatpush.msra.mxu0 %v251
  %275 = vmatpush.msra.mxu0 %v250
  %276 = vmatpush.msra.mxu0 %v249
  %277 = vmatpush.msra.mxu0 %v248
  %278 = vmatpush.msra.mxu0 %v247
  %279 = vmatpush.msra.mxu0 %v246
  %280 = vmatpush.msra.mxu0 %v245
  %281 = vmatpush.msra.mxu0 %v244
  %282 = vmatpush.msra.mxu0 %v243
  %283 = vmatpush.msra.mxu0 %v242
  %284 = vmatpush.msra.mxu0 %v241
  %285 = vmatpush.msra.mxu0 %v240
  %286 = vmatpush.msra.mxu0 %v239
  %287 = vmatpush.msra.mxu0 %v238
  %288 = vmatpush.msra.mxu0 %v237
  %289 = vmatmul.f32.gmra.mxu0 %v233
  %v290 = vpop.f32.mrf.mxu0
  %v291 = vadd.f32 %v271, %v290
  %292 = vmatmul.f32.gmra.mxu0 %v235
  %v293 = vpop.f32.mrf.mxu0
  %v294 = vadd.f32 %v271, %v293
  %295 = vdwg.mxu0
  %296 = vmatpush.msra.mxu0 %v268
  %297 = vmatpush.msra.mxu0 %v267
  %298 = vmatpush.msra.mxu0 %v266
  %299 = vmatpush.msra.mxu0 %v265
  %300 = vmatpush.msra.mxu0 %v264
  %301 = vmatpush.msra.mxu0 %v263
  %302 = vmatpush.msra.mxu0 %v262
  %303 = vmatpush.msra.mxu0 %v261
  %304 = vmatpush.msra.mxu0 %v260
  %305 = vmatpush.msra.mxu0 %v259
  %306 = vmatpush.msra.mxu0 %v258
  %307 = vmatpush.msra.mxu0 %v257
  %308 = vmatpush.msra.mxu0 %v256
  %309 = vmatpush.msra.mxu0 %v255
  %310 = vmatpush.msra.mxu0 %v254
  %311 = vmatpush.msra.mxu0 %v253
  %312 = vmatmul.f32.gmra.mxu0 %v234
  %v313 = vpop.f32.mrf.mxu0
  %v314 = vadd.f32 %v291, %v313
  %315 = vmatmul.f32.gmra.mxu0 %v236
  %v316 = vpop.f32.mrf.mxu0
  %v317 = vadd.f32 %v294, %v316
  %318 = vdwg.mxu0
  %v319 = vld [vmem:[%s2] sm:$0xff]
  %v320 = vld [vmem:[%s2 + $0x8] sm:$0xff]
  %v321 = vld [vmem:[%s3] sm:$0xff]
  %v322 = vld [vmem:[%s3 + $0x8] sm:$0xff]
  %v323 = vld [vmem:[%s3 + $0x10] sm:$0xff]
  %v324 = vld [vmem:[%s3 + $0x18] sm:$0xff]
  %vm325 = vcmask 261120
  %v326 = vsel %vm325, %v164, 0
  %v328 = vsel %vm325, %v167, 0
  %330 = vmatpush.msra.mxu0 0.0
  %331 = vmatpush.msra.mxu0 0.0
  %332 = vmatpush.msra.mxu0 0.0
  %333 = vmatpush.msra.mxu0 0.0
  %334 = vmatpush.msra.mxu0 0.0
  %335 = vmatpush.msra.mxu0 0.0
  %336 = vmatpush.msra.mxu0 0.0
  %337 = vmatpush.msra.mxu0 0.0
  %338 = vmatpush.msra.mxu0 0.0
  %339 = vmatpush.msra.mxu0 0.0
  %340 = vmatpush.msra.mxu0 0.0
  %341 = vmatpush.msra.mxu0 0.0
  %342 = vmatpush.msra.mxu0 %v324
  %343 = vmatpush.msra.mxu0 %v323
  %344 = vmatpush.msra.mxu0 %v322
  %345 = vmatpush.msra.mxu0 %v321
  %346 = vmatmul.f32.gmra.mxu0 %v326
  %v347 = vpop.f32.mrf.mxu0
  %v348 = vadd.f32 0.0, %v347
  %349 = vmatmul.f32.gmra.mxu0 %v328
  %v350 = vpop.f32.mrf.mxu0
  %v351 = vadd.f32 0.0, %v350
  %352 = vdwg.mxu0
  %355 = vrot.lane.b32.xlu0 %v319, 32
  %v356 = vpop.permute.xlu0 %355
  %357 = vrot.lane.b32.xlu0 %v320, 32
  %v358 = vpop.permute.xlu0 %357
  %361 = vrot.lane.b32.xlu0 %v319, 64
  %v362 = vpop.permute.xlu0 %361
  %363 = vrot.lane.b32.xlu0 %v320, 64
  %v364 = vpop.permute.xlu0 %363
  %367 = vrot.lane.b32.xlu0 %v319, 96
  %v368 = vpop.permute.xlu0 %367
  %369 = vrot.lane.b32.xlu0 %v320, 96
  %v370 = vpop.permute.xlu0 %369
  %v373 = vsel %vm325, %v319, %v356
  %v374 = vsel %vm325, %v320, %v358
  %vm375 = vcmask 523264
  %v376 = vsel %vm375, %v373, %v362
  %v377 = vsel %vm375, %v374, %v364
  %vm378 = vcmask 785408
  %v379 = vsel %vm378, %v376, %v368
  %v380 = vsel %vm378, %v377, %v370
  %v381 = vmul.f32 %v348, %v379
  %v382 = vmul.f32 %v351, %v380
  %v383 = vld [vmem:[%s14] sm:$0xff]
  %v384 = vld [vmem:[%s14 + $0x8] sm:$0xff]
  %v385 = vld [vmem:[%s14 + $0x10] sm:$0xff]
  %v386 = vld [vmem:[%s14 + $0x18] sm:$0xff]
  %v387 = vld [vmem:[%s14 + $0x20] sm:$0xff]
  %v388 = vld [vmem:[%s14 + $0x28] sm:$0xff]
  %v389 = vld [vmem:[%s14 + $0x30] sm:$0xff]
  %v390 = vld [vmem:[%s14 + $0x38] sm:$0xff]
  %v391 = vld [vmem:[%s14 + $0x40] sm:$0xff]
  %v392 = vld [vmem:[%s14 + $0x48] sm:$0xff]
  %v393 = vld [vmem:[%s14 + $0x50] sm:$0xff]
  %v394 = vld [vmem:[%s14 + $0x58] sm:$0xff]
  %v395 = vld [vmem:[%s14 + $0x60] sm:$0xff]
  %v396 = vld [vmem:[%s14 + $0x68] sm:$0xff]
  %v397 = vld [vmem:[%s14 + $0x70] sm:$0xff]
  %v398 = vld [vmem:[%s14 + $0x78] sm:$0xff]
  %v399 = vld [vmem:[%s15] sm:$0x1]
  %v401 = vperm.slane %v399, 0
  %403 = vmatpush.msra.mxu0 %v398
  %404 = vmatpush.msra.mxu0 %v397
  %405 = vmatpush.msra.mxu0 %v396
  %406 = vmatpush.msra.mxu0 %v395
  %407 = vmatpush.msra.mxu0 %v394
  %408 = vmatpush.msra.mxu0 %v393
  %409 = vmatpush.msra.mxu0 %v392
  %410 = vmatpush.msra.mxu0 %v391
  %411 = vmatpush.msra.mxu0 %v390
  %412 = vmatpush.msra.mxu0 %v389
  %413 = vmatpush.msra.mxu0 %v388
  %414 = vmatpush.msra.mxu0 %v387
  %415 = vmatpush.msra.mxu0 %v386
  %416 = vmatpush.msra.mxu0 %v385
  %417 = vmatpush.msra.mxu0 %v384
  %418 = vmatpush.msra.mxu0 %v383
  %419 = vmatmul.f32.gmra.mxu0 %v381
  %v420 = vpop.f32.mrf.mxu0
  %v421 = vadd.f32 %v401, %v420
  %422 = vmatmul.f32.gmra.mxu0 %v382
  %v423 = vpop.f32.mrf.mxu0
  %v424 = vadd.f32 %v401, %v423
  %425 = vdwg.mxu0
  %v426 = vmax.f32 %v421, 0.0
  %v427 = vmax.f32 %v424, 0.0
  %v428 = vld [vmem:[%s16] sm:$0xff]
  %v429 = vld [vmem:[%s16 + $0x8] sm:$0xff]
  %v430 = vld [vmem:[%s16 + $0x10] sm:$0xff]
  %v431 = vld [vmem:[%s16 + $0x18] sm:$0xff]
  %v432 = vld [vmem:[%s16 + $0x20] sm:$0xff]
  %v433 = vld [vmem:[%s16 + $0x28] sm:$0xff]
  %v434 = vld [vmem:[%s16 + $0x30] sm:$0xff]
  %v435 = vld [vmem:[%s16 + $0x38] sm:$0xff]
  %v436 = vld [vmem:[%s16 + $0x40] sm:$0xff]
  %v437 = vld [vmem:[%s16 + $0x48] sm:$0xff]
  %v438 = vld [vmem:[%s16 + $0x50] sm:$0xff]
  %v439 = vld [vmem:[%s16 + $0x58] sm:$0xff]
  %v440 = vld [vmem:[%s16 + $0x60] sm:$0xff]
  %v441 = vld [vmem:[%s16 + $0x68] sm:$0xff]
  %v442 = vld [vmem:[%s16 + $0x70] sm:$0xff]
  %v443 = vld [vmem:[%s16 + $0x78] sm:$0xff]
  %v444 = vld [vmem:[%s17] sm:$0x1]
  %v446 = vperm.slane %v444, 0
  %448 = vmatpush.msra.mxu0 %v443
  %449 = vmatpush.msra.mxu0 %v442
  %450 = vmatpush.msra.mxu0 %v441
  %451 = vmatpush.msra.mxu0 %v440
  %452 = vmatpush.msra.mxu0 %v439
  %453 = vmatpush.msra.mxu0 %v438
  %454 = vmatpush.msra.mxu0 %v437
  %455 = vmatpush.msra.mxu0 %v436
  %456 = vmatpush.msra.mxu0 %v435
  %457 = vmatpush.msra.mxu0 %v434
  %458 = vmatpush.msra.mxu0 %v433
  %459 = vmatpush.msra.mxu0 %v432
  %460 = vmatpush.msra.mxu0 %v431
  %461 = vmatpush.msra.mxu0 %v430
  %462 = vmatpush.msra.mxu0 %v429
  %463 = vmatpush.msra.mxu0 %v428
  %464 = vmatmul.f32.gmra.mxu0 %v426
  %v465 = vpop.f32.mrf.mxu0
  %v466 = vadd.f32 %v446, %v465
  %467 = vmatmul.f32.gmra.mxu0 %v427
  %v468 = vpop.f32.mrf.mxu0
  %v469 = vadd.f32 %v446, %v468
  %470 = vdwg.mxu0
  %v471 = vld [vmem:[%s18] sm:$0xff]
  %v472 = vld [vmem:[%s18 + $0x8] sm:$0xff]
  %v473 = vld [vmem:[%s18 + $0x10] sm:$0xff]
  %v474 = vld [vmem:[%s18 + $0x18] sm:$0xff]
  %v475 = vld [vmem:[%s18 + $0x20] sm:$0xff]
  %v476 = vld [vmem:[%s18 + $0x28] sm:$0xff]
  %v477 = vld [vmem:[%s18 + $0x30] sm:$0xff]
  %v478 = vld [vmem:[%s18 + $0x38] sm:$0xff]
  %v479 = vld [vmem:[%s18 + $0x40] sm:$0xff]
  %v480 = vld [vmem:[%s18 + $0x48] sm:$0xff]
  %v481 = vld [vmem:[%s18 + $0x50] sm:$0xff]
  %v482 = vld [vmem:[%s18 + $0x58] sm:$0xff]
  %v483 = vld [vmem:[%s18 + $0x60] sm:$0xff]
  %v484 = vld [vmem:[%s18 + $0x68] sm:$0xff]
  %v485 = vld [vmem:[%s18 + $0x70] sm:$0xff]
  %v486 = vld [vmem:[%s18 + $0x78] sm:$0xff]
  %v487 = vld [vmem:[%s19] sm:$0x1]
  %v489 = vperm.slane %v487, 0
  %491 = vmatpush.msra.mxu0 %v486
  %492 = vmatpush.msra.mxu0 %v485
  %493 = vmatpush.msra.mxu0 %v484
  %494 = vmatpush.msra.mxu0 %v483
  %495 = vmatpush.msra.mxu0 %v482
  %496 = vmatpush.msra.mxu0 %v481
  %497 = vmatpush.msra.mxu0 %v480
  %498 = vmatpush.msra.mxu0 %v479
  %499 = vmatpush.msra.mxu0 %v478
  %500 = vmatpush.msra.mxu0 %v477
  %501 = vmatpush.msra.mxu0 %v476
  %502 = vmatpush.msra.mxu0 %v475
  %503 = vmatpush.msra.mxu0 %v474
  %504 = vmatpush.msra.mxu0 %v473
  %505 = vmatpush.msra.mxu0 %v472
  %506 = vmatpush.msra.mxu0 %v471
  %507 = vmatmul.f32.gmra.mxu0 %v466
  %v508 = vpop.f32.mrf.mxu0
  %v509 = vadd.f32 %v489, %v508
  %510 = vmatmul.f32.gmra.mxu0 %v469
  %v511 = vpop.f32.mrf.mxu0
  %v512 = vadd.f32 %v489, %v511
  %513 = vdwg.mxu0
  %v514 = vmax.f32 %v509, 0.0
  %v515 = vmax.f32 %v512, 0.0
  %518 = vrot.lane.b32.xlu0 %v314, 32
  %v519 = vpop.permute.xlu0 %518
  %520 = vrot.lane.b32.xlu0 %v317, 32
  %v521 = vpop.permute.xlu0 %520
  %526 = vrot.lane.b32.xlu0 %v514, 48
  %v527 = vpop.permute.xlu0 %526
  %528 = vrot.lane.b32.xlu0 %v515, 48
  %v529 = vpop.permute.xlu0 %528
  %v532 = vsel %vm325, %v164, %v519
  %v533 = vsel %vm325, %v167, %v521
  %vm534 = vcmask 392192
  %v535 = vsel %vm534, %v532, %v527
  %v536 = vsel %vm534, %v533, %v529
  %vm537 = vcmask 424960
  %v538 = vsel %vm537, %v535, 0.0
  %v539 = vsel %vm537, %v536, 0.0
  %540 = vst [vmem:[%s20] sm:$0xff] %v538
  %541 = vst [vmem:[%s20 + $0x8] sm:$0xff] %v539
  // Predicated region
  $region82: #{forward.1} parent=0 // pred_check
    _
  $region83: #{forward.1} parent=0 // pred_check_branch
    %543 = sbr.rel (0) target = $region85
  $region84: #{forward.1} parent=0 // pred_region
    _
  $region85: #{forward.1} parent=0 // pred_fallthru
    _
  // Predicated region
  $region86: #{forward.1} parent=0 // pred_check
    _
  $region87: #{forward.1} parent=0 // pred_check_branch
    %545 = sbr.rel (0) target = $region89
  $region88: #{forward.1} parent=0 // pred_region
    _
  $region89: #{forward.1} parent=0 // pred_fallthru
    _

</llo_original>
